<compile_context>
chip_gen: v5e
topology: v5e:2x2
jax: 0.10.0
libtpu: 0.0.40
codegen_flags: <defaults>
</compile_context>

<pallas_src>
import functools
import math

import jax
import jax.numpy as jnp
from jax.experimental import pallas as pl
from jax.experimental.pallas import tpu as pltpu


def _round_up(x, m):
    return ((x + m - 1) // m) * m


def _fast_sigmoid(x):
    # sigmoid(x) == 0.5 * tanh(0.5 * x) + 0.5 : one EUP tanh instead of exp + divide.
    return 0.5 * jnp.tanh(0.5 * x) + 0.5


def gru_encoder_kernel(gi_ref, whh_ref, bhhn_ref, out_ref, h_scr, *, unroll):
    """One grid step == T_CHUNK timesteps of the recurrence for one batch block.

    gi_ref  : (tc*Bb, 3*Hp) f32   precomputed x@W_ih^T + b_ih + b_hh[r,z]   (row = t*Bb + b)
    whh_ref : (Hp, 3*Hp)    bf16  W_hh^T, gates on 128-aligned column blocks (grid-invariant)
    bhhn_ref: (1, Hp)       f32   n-gate slice of b_hh                       (grid-invariant)
    out_ref : (tc*Bb, Hp)   f32   hidden state h_t for every step of the chunk
    h_scr   : (Bb, Hp)      f32   VMEM scratch carrying h across time chunks
    """
    Bb, Hp = h_scr.shape
    tc = gi_ref.shape[0] // Bb

    # hidden=None in the PyTorch module -> zero initial state at the first time chunk.
    @pl.when(pl.program_id(1) == 0)
    def _():
        h_scr[...] = jnp.zeros_like(h_scr)

    whh = whh_ref[...]                                          # bf16, hoisted out of the loop
    bhh_n = jnp.broadcast_to(bhhn_ref[...], (Bb, Hp))           # hoisted broadcast

    def step(t, h):
        row = pl.multiple_of(t * Bb, Bb)
        gi = gi_ref[pl.ds(row, Bb), :]                          # (Bb, 3Hp)
        gh = jnp.dot(h.astype(jnp.bfloat16), whh,
                     preferred_element_type=jnp.float32)        # bf16 MXU, f32 accumulation
        # PyTorch gate order: r, z, n; each gate on its own 128-aligned lane block.
        r = _fast_sigmoid(gi[:, 0:Hp] + gh[:, 0:Hp])
        z = _fast_sigmoid(gi[:, Hp:2 * Hp] + gh[:, Hp:2 * Hp])
        n = jnp.tanh(gi[:, 2 * Hp:3 * Hp] + r * (gh[:, 2 * Hp:3 * Hp] + bhh_n))
        h_new = (1.0 - z) * n + z * h
        out_ref[pl.ds(row, Bb), :] = h_new                      # lane-dense unmasked store
        return h_new

    h_scr[...] = jax.lax.fori_loop(0, tc, step, h_scr[...], unroll=unroll)


def _pack_gate_cols(w_t, H, Hp):
    """(K, 3H) -> (K, 3Hp) with gate g living in columns [g*Hp, g*Hp + H); rest zero."""
    K = w_t.shape[0]
    out = jnp.zeros((K, 3 * Hp), w_t.dtype)
    for g in range(3):
        out = out.at[:, g * Hp:g * Hp + H].set(w_t[:, g * H:(g + 1) * H])
    return out


def encoder_rnn_forward(input_ids, params, *, t_chunk=32, b_chunk=None):
    """Mirrors EncoderRNN.forward(input) with hidden=None.

    input_ids: (B, T) int32 token ids
    returns: (output (B, T, H) float32, hidden (1, B, H) float32)
    """
    B, T = input_ids.shape
    H = params["w_hh"].shape[1]

    Hp = _round_up(H, 128)                  # lane-align each gate block
    if b_chunk is None:
        b_chunk = _round_up(B, 8)           # one batch block unless caller shards (v7x: 2 TCs)
    Bb = _round_up(b_chunk, 8)              # f32 sublane alignment
    Bp = _round_up(B, Bb)
    nb = Bp // Bb

    tc = min(t_chunk, T)
    Tp = _round_up(T, tc)
    n_tchunks = Tp // tc

    # ---- glue (XLA): embed, then the hoisted input projection -----------------------------
    ids = jnp.pad(input_ids, ((0, Bp - B), (0, Tp - T)))               # (Bp, Tp) int32
    ids = jnp.transpose(ids.reshape(nb, Bb, Tp), (0, 2, 1))            # (nb, Tp, Bb) time-major
    emb = jnp.take(params["embedding"], ids, axis=0)                   # (nb, Tp, Bb, E) f32
    # TODO(synk): nn.Dropout treated as eval-mode identity.
    x_flat = emb.reshape(nb * Tp * Bb, -1).astype(jnp.bfloat16)

    wih_p = _pack_gate_cols(jnp.transpose(params["w_ih"]), H, Hp)      # (E, 3Hp)
    bih_p = _pack_gate_cols(params["b_ih"][None, :], H, Hp)            # (1, 3Hp)
    bhh_p = _pack_gate_cols(params["b_hh"][None, :], H, Hp)            # (1, 3Hp)
    gi_bias = bih_p + bhh_p.at[:, 2 * Hp:].set(0.0)                    # fold b_hh[r,z] into GI
    bhhn_p = bhh_p[:, 2 * Hp:3 * Hp]                                   # (1, Hp) n-gate bias

    # h-independent projection as one big XLA matmul (bf16 operands, f32 accumulation); its DMA
    # into the kernel overlaps the recurrence through the pipelined BlockSpec below.
    gi = jnp.dot(x_flat, wih_p.astype(jnp.bfloat16),
                 preferred_element_type=jnp.float32) + gi_bias         # (nb*Tp*Bb, 3Hp) f32

    whh_core = _pack_gate_cols(jnp.transpose(params["w_hh"]), H, Hp)   # (H, 3Hp)
    whh_p = (jnp.zeros((Hp, 3 * Hp), jnp.float32)
             .at[:H, :].set(whh_core).astype(jnp.bfloat16))            # (Hp, 3Hp) bf16

    # cap the unroll once the chunk is large enough to threaten the 64-vreg budget
    unroll = tc if (Bb < 64 or tc < 32) else 4
    kernel = functools.partial(gru_encoder_kernel, unroll=unroll)

    out_flat = pl.pallas_call(
        kernel,
        out_shape=jax.ShapeDtypeStruct((nb * Tp * Bb, Hp), jnp.float32),
        grid_spec=pltpu.PrefetchScalarGridSpec(
            num_scalar_prefetch=0,
            grid=(nb, n_tchunks),
            in_specs=[
                pl.BlockSpec((tc * Bb, 3 * Hp),
                             lambda b, i: (b * n_tchunks + i, 0)),           # GI chunk (pipelined)
                pl.BlockSpec((Hp, 3 * Hp), lambda b, i: (0, 0),
                             pipeline_mode=pl.Buffered(1)),                  # W_hh^T (invariant)
                pl.BlockSpec((1, Hp), lambda b, i: (0, 0),
                             pipeline_mode=pl.Buffered(1)),                  # b_hh n-gate
            ],
            out_specs=pl.BlockSpec((tc * Bb, Hp),
                                   lambda b, i: (b * n_tchunks + i, 0)),     # per-chunk out slab
            scratch_shapes=[pltpu.VMEM((Bb, Hp), jnp.float32)],              # h carry
        ),
        compiler_params=pltpu.CompilerParams(
            dimension_semantics=("parallel", "arbitrary"),   # batch across TCs, time sequential
            vmem_limit_bytes=48 * 1024 * 1024),
    )(gi, whh_p, bhhn_p)

    out = out_flat.reshape(nb, Tp, Bb, Hp)
    out = jnp.transpose(out, (0, 2, 1, 3)).reshape(Bp, Tp, Hp)[:B, :T, :H]   # (B, T, H)
    hidden = out[:, T - 1, :][None, :, :]                                    # (1, B, H)
    return out, hidden


def init_params(key, vocab_size, embedding_dim, hidden_dim):
    """Deterministic synthetic parameters matching nn.Embedding / nn.GRU shapes (PyTorch layout)."""
    k1, k2, k3, k4, k5 = jax.random.split(key, 5)
    bound = 1.0 / math.sqrt(hidden_dim)
    return dict(
        embedding=jax.random.normal(k1, (vocab_size, embedding_dim), jnp.float32),
        w_ih=jax.random.uniform(k2, (3 * hidden_dim, embedding_dim),
                                jnp.float32, -bound, bound),           # weight_ih_l0
        w_hh=jax.random.uniform(k3, (3 * hidden_dim, hidden_dim),
                                jnp.float32, -bound, bound),           # weight_hh_l0
        b_ih=jax.random.uniform(k4, (3 * hidden_dim,), jnp.float32, -bound, bound),
        b_hh=jax.random.uniform(k5, (3 * hidden_dim,), jnp.float32, -bound, bound),
    )


def _reference_forward(input_ids, params):
    """Pure-JAX f32 reference GRU (PyTorch semantics) for the correctness check."""
    emb = jnp.take(params["embedding"], input_ids, axis=0).astype(jnp.float32)
    B, T, E = emb.shape
    H = params["w_hh"].shape[1]
    w_ih_T = jnp.transpose(params["w_ih"])
    w_hh_T = jnp.transpose(params["w_hh"])

    def step(h, x_t):
        gi = x_t @ w_ih_T + params["b_ih"]
        gh = h @ w_hh_T + params["b_hh"]
        r = jax.nn.sigmoid(gi[:, :H] + gh[:, :H])
        z = jax.nn.sigmoid(gi[:, H:2 * H] + gh[:, H:2 * H])
        n = jnp.tanh(gi[:, 2 * H:] + r * gh[:, 2 * H:])
        h_new = (1.0 - z) * n + z * h
        return h_new, h_new

    h0 = jnp.zeros((B, H), jnp.float32)
    h_last, outs = jax.lax.scan(step, h0, jnp.transpose(emb, (1, 0, 2)))
    return jnp.transpose(outs, (1, 0, 2)), h_last[None]


if __name__ == "__main__":
    vocab_size, embedding_dim, hidden_dim = 50, 32, 32
    seq = 8

    key = jax.random.PRNGKey(0)
    pkey, ikey, jkey = jax.random.split(key, 3)
    params = init_params(pkey, vocab_size, embedding_dim, hidden_dim)

    # bf16 MXU operands -> tolerance loosened vs the old f32 kernel (accumulation stays f32).
    TOL = dict(atol=3e-2, rtol=3e-2)

    # Case 1: batch=2, t_chunk=4 -> 2 time chunks, exercising the cross-chunk hidden carry.
    input_ids = jax.random.randint(ikey, (2, seq), 0, vocab_size, dtype=jnp.int32)
    output, hidden = encoder_rnn_forward(input_ids, params, t_chunk=4)
    jax.block_until_ready((output, hidden))
    ref_out, ref_hidden = _reference_forward(input_ids, params)
    assert output.shape == (2, seq, hidden_dim)
    assert hidden.shape == (1, 2, hidden_dim)
    assert jnp.allclose(output, ref_out, **TOL)
    assert jnp.allclose(hidden, ref_hidden, **TOL)

    # Case 2: batch=10 split into two batch blocks of 8 -> exercises the parallel batch grid axis
    # (sharded across v7x's 2 TensorCores) and padded batch rows.
    input_ids2 = jax.random.randint(jkey, (10, seq), 0, vocab_size, dtype=jnp.int32)
    output2, hidden2 = encoder_rnn_forward(input_ids2, params, b_chunk=8)
    jax.block_until_ready((output2, hidden2))
    ref_out2, ref_hidden2 = _reference_forward(input_ids2, params)
    assert output2.shape == (10, seq, hidden_dim)
    assert hidden2.shape == (1, 10, hidden_dim)
    assert jnp.allclose(output2, ref_out2, **TOL)
    assert jnp.allclose(hidden2, ref_hidden2, **TOL)

    print("KERNEL_OK")
</pallas_src>

<mosaic_0001>
module attributes {stable_mosaic.version = 11 : i64} {
  func.func @gru_encoder_kernel(%arg0: i32, %arg1: i32, %arg2: memref<32x384xf32, #tpu.memory_space<vmem>>, %arg3: memref<128x384xbf16, #tpu.memory_space<vmem>>, %arg4: memref<1x128xf32, #tpu.memory_space<vmem>>, %arg5: memref<32x128xf32, #tpu.memory_space<vmem>>, %arg6: memref<8x128xf32, #tpu.memory_space<vmem>>) attributes {dimension_semantics = [#tpu.dimension_semantics<parallel>, #tpu.dimension_semantics<arbitrary>], iteration_bounds = array<i64: 1, 2>, scalar_prefetch = 0 : i64, scratch_operands = 1 : i64, tpu.core_type = #tpu.core_type<tc>, window_params = [{transform_indices = @transform_0, window_bounds = array<i64: 32, 384>}, {pipeline_mode = #tpu.pipeline_mode<synchronous>, transform_indices = @transform_1, window_bounds = array<i64: 128, 384>}, {pipeline_mode = #tpu.pipeline_mode<synchronous>, transform_indices = @transform_2, window_bounds = array<i64: 1, 128>}, {transform_indices = @transform_3, window_bounds = array<i64: 32, 128>}]} {
    %c0_i32 = arith.constant 0 : i32
    %0 = arith.cmpi eq, %arg1, %c0_i32 : i32
    %1 = arith.extui %0 : i1 to i32
    %c0_i32_0 = arith.constant 0 : i32
    %2 = arith.cmpi ne, %1, %c0_i32_0 : i32
    scf.if %2 {
      %cst_51 = arith.constant 0.000000e+00 : f32
      %165 = vector.broadcast %cst_51 : f32 to vector<8x128xf32>
      %c0_52 = arith.constant 0 : index
      %c0_53 = arith.constant 0 : index
      %166 = vector.load %arg6[%c0_52, %c0_53] : memref<8x128xf32, #tpu.memory_space<vmem>>, vector<8x128xf32>
      tpu.vector_store %arg6[%c0_52, %c0_53], %165 {strides = array<i32>} : memref<8x128xf32, #tpu.memory_space<vmem>>, vector<8x128xf32>,
    } else {
    }
    %c0 = arith.constant 0 : index
    %c0_1 = arith.constant 0 : index
    %3 = vector.load %arg3[%c0, %c0_1] : memref<128x384xbf16, #tpu.memory_space<vmem>>, vector<128x384xbf16>
    %c0_2 = arith.constant 0 : index
    %c0_3 = arith.constant 0 : index
    %4 = vector.load %arg4[%c0_2, %c0_3] : memref<1x128xf32, #tpu.memory_space<vmem>>, vector<1x128xf32>
    %5 = vector.shape_cast %4 : vector<1x128xf32> to vector<1x128xf32>
    %6 = vector.broadcast %5 : vector<1x128xf32> to vector<8x128xf32>
    %c0_4 = arith.constant 0 : index
    %c0_5 = arith.constant 0 : index
    %7 = vector.load %arg6[%c0_4, %c0_5] : memref<8x128xf32, #tpu.memory_space<vmem>>, vector<8x128xf32>
    %c0_i32_6 = arith.constant 0 : i32
    %c8_i32 = arith.constant 8 : i32
    %8 = arith.muli %c0_i32_6, %c8_i32 : i32
    %9 = tpu.assume_multiple %8, 8 : i32
    %10 = arith.index_cast %9 : i32 to index
    %c0_7 = arith.constant 0 : index
    %11 = vector.load %arg2[%10, %c0_7] : memref<32x384xf32, #tpu.memory_space<vmem>>, vector<8x384xf32>
    %12 = arith.truncf %7 : vector<8x128xf32> to vector<8x128xbf16>
    %cst = arith.constant dense<0.000000e+00> : vector<8x384xf32>
    %13 = tpu.matmul %12, %3, %cst {dimension_numbers = #tpu.dot_dimension_numbers<[1], [0], [0], [1], [0, 0, 1, 1], [], []>} : vector<8x128xbf16>, vector<128x384xbf16>, vector<8x384xf32> -> vector<8x384xf32>
    %14 = vector.extract_strided_slice %11 {offsets = [0, 0], sizes = [8, 128], strides = [1, 1]} : vector<8x384xf32> to vector<8x128xf32>
    %15 = vector.extract_strided_slice %13 {offsets = [0, 0], sizes = [8, 128], strides = [1, 1]} : vector<8x384xf32> to vector<8x128xf32>
    %16 = arith.addf %14, %15 : vector<8x128xf32>
    %cst_8 = arith.constant 5.000000e-01 : f32
    %17 = vector.broadcast %cst_8 : f32 to vector<8x128xf32>
    %18 = arith.mulf %17, %16 : vector<8x128xf32>
    %19 = math.tanh %18 : vector<8x128xf32>
    %cst_9 = arith.constant 5.000000e-01 : f32
    %20 = vector.broadcast %cst_9 : f32 to vector<8x128xf32>
    %21 = arith.mulf %20, %19 : vector<8x128xf32>
    %cst_10 = arith.constant 5.000000e-01 : f32
    %22 = vector.broadcast %cst_10 : f32 to vector<8x128xf32>
    %23 = arith.addf %21, %22 : vector<8x128xf32>
    %24 = vector.extract_strided_slice %11 {offsets = [0, 128], sizes = [8, 128], strides = [1, 1]} : vector<8x384xf32> to vector<8x128xf32>
    %25 = vector.extract_strided_slice %13 {offsets = [0, 128], sizes = [8, 128], strides = [1, 1]} : vector<8x384xf32> to vector<8x128xf32>
    %26 = arith.addf %24, %25 : vector<8x128xf32>
    %cst_11 = arith.constant 5.000000e-01 : f32
    %27 = vector.broadcast %cst_11 : f32 to vector<8x128xf32>
    %28 = arith.mulf %27, %26 : vector<8x128xf32>
    %29 = math.tanh %28 : vector<8x128xf32>
    %cst_12 = arith.constant 5.000000e-01 : f32
    %30 = vector.broadcast %cst_12 : f32 to vector<8x128xf32>
    %31 = arith.mulf %30, %29 : vector<8x128xf32>
    %cst_13 = arith.constant 5.000000e-01 : f32
    %32 = vector.broadcast %cst_13 : f32 to vector<8x128xf32>
    %33 = arith.addf %31, %32 : vector<8x128xf32>
    %34 = vector.extract_strided_slice %11 {offsets = [0, 256], sizes = [8, 128], strides = [1, 1]} : vector<8x384xf32> to vector<8x128xf32>
    %35 = vector.extract_strided_slice %13 {offsets = [0, 256], sizes = [8, 128], strides = [1, 1]} : vector<8x384xf32> to vector<8x128xf32>
    %36 = arith.addf %35, %6 : vector<8x128xf32>
    %37 = arith.mulf %23, %36 : vector<8x128xf32>
    %38 = arith.addf %34, %37 : vector<8x128xf32>
    %39 = math.tanh %38 : vector<8x128xf32>
    %cst_14 = arith.constant 1.000000e+00 : f32
    %40 = vector.broadcast %cst_14 : f32 to vector<8x128xf32>
    %41 = arith.subf %40, %33 : vector<8x128xf32>
    %42 = arith.mulf %41, %39 : vector<8x128xf32>
    %43 = arith.mulf %33, %7 : vector<8x128xf32>
    %44 = arith.addf %42, %43 : vector<8x128xf32>
    %45 = arith.index_cast %9 : i32 to index
    %c0_15 = arith.constant 0 : index
    %46 = vector.load %arg5[%45, %c0_15] : memref<32x128xf32, #tpu.memory_space<vmem>>, vector<8x128xf32>
    tpu.vector_store %arg5[%45, %c0_15], %44 {strides = array<i32>} : memref<32x128xf32, #tpu.memory_space<vmem>>, vector<8x128xf32>,
    %c1_i32 = arith.constant 1 : i32
    %c8_i32_16 = arith.constant 8 : i32
    %47 = arith.muli %c1_i32, %c8_i32_16 : i32
    %48 = tpu.assume_multiple %47, 8 : i32
    %49 = arith.index_cast %48 : i32 to index
    %c0_17 = arith.constant 0 : index
    %50 = vector.load %arg2[%49, %c0_17] : memref<32x384xf32, #tpu.memory_space<vmem>>, vector<8x384xf32>
    %51 = arith.truncf %44 : vector<8x128xf32> to vector<8x128xbf16>
    %cst_18 = arith.constant dense<0.000000e+00> : vector<8x384xf32>
    %52 = tpu.matmul %51, %3, %cst_18 {dimension_numbers = #tpu.dot_dimension_numbers<[1], [0], [0], [1], [0, 0, 1, 1], [], []>} : vector<8x128xbf16>, vector<128x384xbf16>, vector<8x384xf32> -> vector<8x384xf32>
    %53 = vector.extract_strided_slice %50 {offsets = [0, 0], sizes = [8, 128], strides = [1, 1]} : vector<8x384xf32> to vector<8x128xf32>
    %54 = vector.extract_strided_slice %52 {offsets = [0, 0], sizes = [8, 128], strides = [1, 1]} : vector<8x384xf32> to vector<8x128xf32>
    %55 = arith.addf %53, %54 : vector<8x128xf32>
    %cst_19 = arith.constant 5.000000e-01 : f32
    %56 = vector.broadcast %cst_19 : f32 to vector<8x128xf32>
    %57 = arith.mulf %56, %55 : vector<8x128xf32>
    %58 = math.tanh %57 : vector<8x128xf32>
    %cst_20 = arith.constant 5.000000e-01 : f32
    %59 = vector.broadcast %cst_20 : f32 to vector<8x128xf32>
    %60 = arith.mulf %59, %58 : vector<8x128xf32>
    %cst_21 = arith.constant 5.000000e-01 : f32
    %61 = vector.broadcast %cst_21 : f32 to vector<8x128xf32>
    %62 = arith.addf %60, %61 : vector<8x128xf32>
    %63 = vector.extract_strided_slice %50 {offsets = [0, 128], sizes = [8, 128], strides = [1, 1]} : vector<8x384xf32> to vector<8x128xf32>
    %64 = vector.extract_strided_slice %52 {offsets = [0, 128], sizes = [8, 128], strides = [1, 1]} : vector<8x384xf32> to vector<8x128xf32>
    %65 = arith.addf %63, %64 : vector<8x128xf32>
    %cst_22 = arith.constant 5.000000e-01 : f32
    %66 = vector.broadcast %cst_22 : f32 to vector<8x128xf32>
    %67 = arith.mulf %66, %65 : vector<8x128xf32>
    %68 = math.tanh %67 : vector<8x128xf32>
    %cst_23 = arith.constant 5.000000e-01 : f32
    %69 = vector.broadcast %cst_23 : f32 to vector<8x128xf32>
    %70 = arith.mulf %69, %68 : vector<8x128xf32>
    %cst_24 = arith.constant 5.000000e-01 : f32
    %71 = vector.broadcast %cst_24 : f32 to vector<8x128xf32>
    %72 = arith.addf %70, %71 : vector<8x128xf32>
    %73 = vector.extract_strided_slice %50 {offsets = [0, 256], sizes = [8, 128], strides = [1, 1]} : vector<8x384xf32> to vector<8x128xf32>
    %74 = vector.extract_strided_slice %52 {offsets = [0, 256], sizes = [8, 128], strides = [1, 1]} : vector<8x384xf32> to vector<8x128xf32>
    %75 = arith.addf %74, %6 : vector<8x128xf32>
    %76 = arith.mulf %62, %75 : vector<8x128xf32>
    %77 = arith.addf %73, %76 : vector<8x128xf32>
    %78 = math.tanh %77 : vector<8x128xf32>
    %cst_25 = arith.constant 1.000000e+00 : f32
    %79 = vector.broadcast %cst_25 : f32 to vector<8x128xf32>
    %80 = arith.subf %79, %72 : vector<8x128xf32>
    %81 = arith.mulf %80, %78 : vector<8x128xf32>
    %82 = arith.mulf %72, %44 : vector<8x128xf32>
    %83 = arith.addf %81, %82 : vector<8x128xf32>
    %84 = arith.index_cast %48 : i32 to index
    %c0_26 = arith.constant 0 : index
    %85 = vector.load %arg5[%84, %c0_26] : memref<32x128xf32, #tpu.memory_space<vmem>>, vector<8x128xf32>
    tpu.vector_store %arg5[%84, %c0_26], %83 {strides = array<i32>} : memref<32x128xf32, #tpu.memory_space<vmem>>, vector<8x128xf32>,
    %c2_i32 = arith.constant 2 : i32
    %c8_i32_27 = arith.constant 8 : i32
    %86 = arith.muli %c2_i32, %c8_i32_27 : i32
    %87 = tpu.assume_multiple %86, 8 : i32
    %88 = arith.index_cast %87 : i32 to index
    %c0_28 = arith.constant 0 : index
    %89 = vector.load %arg2[%88, %c0_28] : memref<32x384xf32, #tpu.memory_space<vmem>>, vector<8x384xf32>
    %90 = arith.truncf %83 : vector<8x128xf32> to vector<8x128xbf16>
    %cst_29 = arith.constant dense<0.000000e+00> : vector<8x384xf32>
    %91 = tpu.matmul %90, %3, %cst_29 {dimension_numbers = #tpu.dot_dimension_numbers<[1], [0], [0], [1], [0, 0, 1, 1], [], []>} : vector<8x128xbf16>, vector<128x384xbf16>, vector<8x384xf32> -> vector<8x384xf32>
    %92 = vector.extract_strided_slice %89 {offsets = [0, 0], sizes = [8, 128], strides = [1, 1]} : vector<8x384xf32> to vector<8x128xf32>
    %93 = vector.extract_strided_slice %91 {offsets = [0, 0], sizes = [8, 128], strides = [1, 1]} : vector<8x384xf32> to vector<8x128xf32>
    %94 = arith.addf %92, %93 : vector<8x128xf32>
    %cst_30 = arith.constant 5.000000e-01 : f32
    %95 = vector.broadcast %cst_30 : f32 to vector<8x128xf32>
    %96 = arith.mulf %95, %94 : vector<8x128xf32>
    %97 = math.tanh %96 : vector<8x128xf32>
    %cst_31 = arith.constant 5.000000e-01 : f32
    %98 = vector.broadcast %cst_31 : f32 to vector<8x128xf32>
    %99 = arith.mulf %98, %97 : vector<8x128xf32>
    %cst_32 = arith.constant 5.000000e-01 : f32
    %100 = vector.broadcast %cst_32 : f32 to vector<8x128xf32>
    %101 = arith.addf %99, %100 : vector<8x128xf32>
    %102 = vector.extract_strided_slice %89 {offsets = [0, 128], sizes = [8, 128], strides = [1, 1]} : vector<8x384xf32> to vector<8x128xf32>
    %103 = vector.extract_strided_slice %91 {offsets = [0, 128], sizes = [8, 128], strides = [1, 1]} : vector<8x384xf32> to vector<8x128xf32>
    %104 = arith.addf %102, %103 : vector<8x128xf32>
    %cst_33 = arith.constant 5.000000e-01 : f32
    %105 = vector.broadcast %cst_33 : f32 to vector<8x128xf32>
    %106 = arith.mulf %105, %104 : vector<8x128xf32>
    %107 = math.tanh %106 : vector<8x128xf32>
    %cst_34 = arith.constant 5.000000e-01 : f32
    %108 = vector.broadcast %cst_34 : f32 to vector<8x128xf32>
    %109 = arith.mulf %108, %107 : vector<8x128xf32>
    %cst_35 = arith.constant 5.000000e-01 : f32
    %110 = vector.broadcast %cst_35 : f32 to vector<8x128xf32>
    %111 = arith.addf %109, %110 : vector<8x128xf32>
    %112 = vector.extract_strided_slice %89 {offsets = [0, 256], sizes = [8, 128], strides = [1, 1]} : vector<8x384xf32> to vector<8x128xf32>
    %113 = vector.extract_strided_slice %91 {offsets = [0, 256], sizes = [8, 128], strides = [1, 1]} : vector<8x384xf32> to vector<8x128xf32>
    %114 = arith.addf %113, %6 : vector<8x128xf32>
    %115 = arith.mulf %101, %114 : vector<8x128xf32>
    %116 = arith.addf %112, %115 : vector<8x128xf32>
    %117 = math.tanh %116 : vector<8x128xf32>
    %cst_36 = arith.constant 1.000000e+00 : f32
    %118 = vector.broadcast %cst_36 : f32 to vector<8x128xf32>
    %119 = arith.subf %118, %111 : vector<8x128xf32>
    %120 = arith.mulf %119, %117 : vector<8x128xf32>
    %121 = arith.mulf %111, %83 : vector<8x128xf32>
    %122 = arith.addf %120, %121 : vector<8x128xf32>
    %123 = arith.index_cast %87 : i32 to index
    %c0_37 = arith.constant 0 : index
    %124 = vector.load %arg5[%123, %c0_37] : memref<32x128xf32, #tpu.memory_space<vmem>>, vector<8x128xf32>
    tpu.vector_store %arg5[%123, %c0_37], %122 {strides = array<i32>} : memref<32x128xf32, #tpu.memory_space<vmem>>, vector<8x128xf32>,
    %c3_i32 = arith.constant 3 : i32
    %c8_i32_38 = arith.constant 8 : i32
    %125 = arith.muli %c3_i32, %c8_i32_38 : i32
    %126 = tpu.assume_multiple %125, 8 : i32
    %127 = arith.index_cast %126 : i32 to index
    %c0_39 = arith.constant 0 : index
    %128 = vector.load %arg2[%127, %c0_39] : memref<32x384xf32, #tpu.memory_space<vmem>>, vector<8x384xf32>
    %129 = arith.truncf %122 : vector<8x128xf32> to vector<8x128xbf16>
    %cst_40 = arith.constant dense<0.000000e+00> : vector<8x384xf32>
    %130 = tpu.matmul %129, %3, %cst_40 {dimension_numbers = #tpu.dot_dimension_numbers<[1], [0], [0], [1], [0, 0, 1, 1], [], []>} : vector<8x128xbf16>, vector<128x384xbf16>, vector<8x384xf32> -> vector<8x384xf32>
    %131 = vector.extract_strided_slice %128 {offsets = [0, 0], sizes = [8, 128], strides = [1, 1]} : vector<8x384xf32> to vector<8x128xf32>
    %132 = vector.extract_strided_slice %130 {offsets = [0, 0], sizes = [8, 128], strides = [1, 1]} : vector<8x384xf32> to vector<8x128xf32>
    %133 = arith.addf %131, %132 : vector<8x128xf32>
    %cst_41 = arith.constant 5.000000e-01 : f32
    %134 = vector.broadcast %cst_41 : f32 to vector<8x128xf32>
    %135 = arith.mulf %134, %133 : vector<8x128xf32>
    %136 = math.tanh %135 : vector<8x128xf32>
    %cst_42 = arith.constant 5.000000e-01 : f32
    %137 = vector.broadcast %cst_42 : f32 to vector<8x128xf32>
    %138 = arith.mulf %137, %136 : vector<8x128xf32>
    %cst_43 = arith.constant 5.000000e-01 : f32
    %139 = vector.broadcast %cst_43 : f32 to vector<8x128xf32>
    %140 = arith.addf %138, %139 : vector<8x128xf32>
    %141 = vector.extract_strided_slice %128 {offsets = [0, 128], sizes = [8, 128], strides = [1, 1]} : vector<8x384xf32> to vector<8x128xf32>
    %142 = vector.extract_strided_slice %130 {offsets = [0, 128], sizes = [8, 128], strides = [1, 1]} : vector<8x384xf32> to vector<8x128xf32>
    %143 = arith.addf %141, %142 : vector<8x128xf32>
    %cst_44 = arith.constant 5.000000e-01 : f32
    %144 = vector.broadcast %cst_44 : f32 to vector<8x128xf32>
    %145 = arith.mulf %144, %143 : vector<8x128xf32>
    %146 = math.tanh %145 : vector<8x128xf32>
    %cst_45 = arith.constant 5.000000e-01 : f32
    %147 = vector.broadcast %cst_45 : f32 to vector<8x128xf32>
    %148 = arith.mulf %147, %146 : vector<8x128xf32>
    %cst_46 = arith.constant 5.000000e-01 : f32
    %149 = vector.broadcast %cst_46 : f32 to vector<8x128xf32>
    %150 = arith.addf %148, %149 : vector<8x128xf32>
    %151 = vector.extract_strided_slice %128 {offsets = [0, 256], sizes = [8, 128], strides = [1, 1]} : vector<8x384xf32> to vector<8x128xf32>
    %152 = vector.extract_strided_slice %130 {offsets = [0, 256], sizes = [8, 128], strides = [1, 1]} : vector<8x384xf32> to vector<8x128xf32>
    %153 = arith.addf %152, %6 : vector<8x128xf32>
    %154 = arith.mulf %140, %153 : vector<8x128xf32>
    %155 = arith.addf %151, %154 : vector<8x128xf32>
    %156 = math.tanh %155 : vector<8x128xf32>
    %cst_47 = arith.constant 1.000000e+00 : f32
    %157 = vector.broadcast %cst_47 : f32 to vector<8x128xf32>
    %158 = arith.subf %157, %150 : vector<8x128xf32>
    %159 = arith.mulf %158, %156 : vector<8x128xf32>
    %160 = arith.mulf %150, %122 : vector<8x128xf32>
    %161 = arith.addf %159, %160 : vector<8x128xf32>
    %162 = arith.index_cast %126 : i32 to index
    %c0_48 = arith.constant 0 : index
    %163 = vector.load %arg5[%162, %c0_48] : memref<32x128xf32, #tpu.memory_space<vmem>>, vector<8x128xf32>
    tpu.vector_store %arg5[%162, %c0_48], %161 {strides = array<i32>} : memref<32x128xf32, #tpu.memory_space<vmem>>, vector<8x128xf32>,
    %c4_i32 = arith.constant 4 : i32
    %c0_49 = arith.constant 0 : index
    %c0_50 = arith.constant 0 : index
    %164 = vector.load %arg6[%c0_49, %c0_50] : memref<8x128xf32, #tpu.memory_space<vmem>>, vector<8x128xf32>
    tpu.vector_store %arg6[%c0_49, %c0_50], %161 {strides = array<i32>} : memref<8x128xf32, #tpu.memory_space<vmem>>, vector<8x128xf32>,
    return
  }
  func.func @transform_0(%arg0: i32, %arg1: i32) -> (i32, i32) {
    %c2_i32 = arith.constant 2 : i32
    %0 = arith.muli %arg0, %c2_i32 : i32
    %1 = arith.addi %0, %arg1 : i32
    %c0_i32 = arith.constant 0 : i32
    %c0_i32_0 = arith.constant 0 : i32
    return %1, %c0_i32 : i32, i32
  }
  func.func @transform_1(%arg0: i32, %arg1: i32) -> (i32, i32) {
    %c0_i32 = arith.constant 0 : i32
    %c0_i32_0 = arith.constant 0 : i32
    %c0_i32_1 = arith.constant 0 : i32
    return %c0_i32, %c0_i32_0 : i32, i32
  }
  func.func @transform_2(%arg0: i32, %arg1: i32) -> (i32, i32) {
    %c0_i32 = arith.constant 0 : i32
    %c0_i32_0 = arith.constant 0 : i32
    %c0_i32_1 = arith.constant 0 : i32
    return %c0_i32, %c0_i32_0 : i32, i32
  }
  func.func @transform_3(%arg0: i32, %arg1: i32) -> (i32, i32) {
    %c2_i32 = arith.constant 2 : i32
    %0 = arith.muli %arg0, %c2_i32 : i32
    %1 = arith.addi %0, %arg1 : i32
    %c0_i32 = arith.constant 0 : i32
    %c0_i32_0 = arith.constant 0 : i32
    return %1, %c0_i32 : i32, i32
  }
}

</mosaic_0001>

<llo_original>
// kernel: tpu_custom_call.1
$region0: #{tpu_custom_call.1}
  #allocation0 [shape = 'u32[]', space=smem, size = 0x4, offset = 0x4, fixed_abs, tag = 'smem constant byte address 0x4 - core index']
  #allocation1 [shape = 'u32[72,128]{1,0:T(1,128)}', space=vmem, size = 0x9000, scoped, tag = 'internal scratch']
  #allocation2 [shape = 'f32[8,128]{1,0:T(8,128)}', space=vmem, size = 0x1000, scoped, tag = 'scratch operand']
  %s0 = inlined_call_operand.hbm [shape: f32[64,384], index: 0, kind: input, shape index: {}]
  %s1 = inlined_call_operand.hbm [shape: bf16[128,384], index: 1, kind: input, shape index: {}]
  %s2 = inlined_call_operand.vmem [shape: f32[1,128], index: 2, kind: input, shape index: {}]
  %s3 = inlined_call_operand.hbm [shape: f32[64,128], index: 3, kind: output, shape index: {}]
  %s4 = sld [smem:[#allocation0]]
  $region57: #{tpu_custom_call.1} parent=0
    _
  %s6 = ssub.s32 1, %s4
  %s7 = scalar_select 0, %s6, %s4
  $region1: #{tpu_custom_call.1} parent=0
    #allocation3 [shape = 'u8[98304]{0}', space=vmem, size = 0x18000, scoped, tag = 'input window, operand 0']
    #allocation4 [shape = 's32[2]{0}', space=sflag, size = 0x8, scoped, tag = 'scoped memory for tpu_custom_call.1']
    #allocation5 [shape = 's32[2]{0}', space=sflag, size = 0x8, scoped, tag = 'scoped memory for tpu_custom_call.1']
    #allocation6 [shape = 'u8[98304]{0}', space=vmem, size = 0x18000, scoped, tag = 'input window, operand 1, single buffered']
    #allocation7 [shape = 's32[1]{0}', space=sflag, size = 0x4, scoped, tag = 'scoped memory for tpu_custom_call.1']
    #allocation8 [shape = 'u8[32768]{0}', space=vmem, size = 0x8000, scoped, tag = 'output window, operand 0']
    %8 = vsyncpa [#allocation4], 0
    %s9 = scalar_lea.sflag [#allocation4], 1
    %10 = vsyncpa %s9, 0
    %11 = vsyncpa [#allocation7], 0
    %12 = vsyncpa [#allocation5], 0
    %s13 = scalar_lea.sflag [#allocation5], 1
    %14 = vsyncpa %s13, 0
    loop: start=0, step=1, limit=4
    $region2: #{tpu_custom_call.1} parent=1 // loop_pre_header
      _
    $region3: #{tpu_custom_call.1} parent=1 // loop_header
      %s16 = sphi 0, %s20
      %p17 = scmp.ge.s32.totalorder %s16, 4
      %s23 = sphi 0, %s35
      %s24 = sphi 0, %s31
      %s25 = sphi 0, %s23
      %s26 = sphi 0, %s24
      %s27 = sphi 0, %s25
      %s28 = sphi 0, %s26
      %s42 = sphi 0, %s44
      %s45 = sphi 0, %s42
      %s46 = sphi 0, %s45
      %s62 = sphi 0, %s46
      %s66 = sphi 0, %s66
      %s68 = sphi 0, %s66
      %s69 = sphi 0, %s68
      %s83 = sphi 0, %s69
      %s87 = sphi 0, %s87
      %s89 = sphi 0, %s87
      %s90 = sphi 0, %s89
      %s104 = sphi 0, %s90
      %s114 = sphi 0, %s116
      %s117 = sphi 0, %s114
      %s118 = sphi 0, %s117
      %s134 = sphi 0, %s118
    $region4: #{tpu_custom_call.1} parent=1 // loop_header_branch
      %19 = sbr.rel (%p17) target = $region8
    $region5: #{tpu_custom_call.1} parent=1 // loop_body
      %s21 = ssub.s32 %s16, 1
      %s22 = ssub.s32 %s16, 2
      %s29 = sadd.s32 1, %s24
      %p30 = scmp.ge.s32.totalorder %s29, 2
      %s31 = scalar_select %p30, 0, %s29
      %s32 = sadd.s32 1, %s23
      %s33 = scalar_select %p30, %s32, %s23
      %p34 = scmp.ge.s32.totalorder %s33, 1
      %s35 = scalar_select %p34, 0, %s33
      %s36 = smul.u32 %s23, 2
      %s37 = sadd.s32 %s36, %s24
      %s38 = smul.u32 %s35, 2
      %s39 = sadd.s32 %s38, %s31
      %s40 = ssub.s32 %s37, %s39
      %p41 = scmp.eq.s32.totalorder %s40, 0
      %s43 = sadd.s32 %s42, 1
      %s44 = scalar_select %p41, %s42, %s43
      %p47 = pneg %p41
      %p48 = scmp.eq.s32.totalorder %s16, 1
      %p49 = por %p47, %p48
      %p50 = scmp.ne.s32.totalorder %s42, %s45
      %p51 = scmp.eq.s32.totalorder %s16, 0
      %p52 = por %p50, %p51
      %p53 = scmp.ne.s32.totalorder %s42, %s45
      %p54 = scmp.eq.s32.totalorder %s21, 1
      %p55 = por %p53, %p54
      %p56 = scmp.ne.s32.totalorder %s45, %s46
      %p57 = scmp.eq.s32.totalorder %s21, 0
      %p58 = por %p56, %p57
      %p59 = scmp.ne.s32.totalorder %s45, %s46
      %p60 = scmp.eq.s32.totalorder %s22, 1
      %p61 = por %p59, %p60
      %p63 = scmp.ne.s32.totalorder %s46, %s62
      %p64 = scmp.eq.s32.totalorder %s22, 0
      %p65 = por %p63, %p64
      %s67 = sadd.s32 %s66, 1
      %p70 = scmp.eq.s32.totalorder %s16, 1
      %p71 = scmp.ne.s32.totalorder %s66, %s68
      %p72 = scmp.eq.s32.totalorder %s16, 0
      %p73 = por %p71, %p72
      %p74 = scmp.ne.s32.totalorder %s66, %s68
      %p75 = scmp.eq.s32.totalorder %s21, 1
      %p76 = por %p74, %p75
      %p77 = scmp.ne.s32.totalorder %s68, %s69
      %p78 = scmp.eq.s32.totalorder %s21, 0
      %p79 = por %p77, %p78
      %p80 = scmp.ne.s32.totalorder %s68, %s69
      %p81 = scmp.eq.s32.totalorder %s22, 1
      %p82 = por %p80, %p81
      %p84 = scmp.ne.s32.totalorder %s69, %s83
      %p85 = scmp.eq.s32.totalorder %s22, 0
      %p86 = por %p84, %p85
      %s88 = sadd.s32 %s87, 1
      %p91 = scmp.eq.s32.totalorder %s16, 1
      %p92 = scmp.ne.s32.totalorder %s87, %s89
      %p93 = scmp.eq.s32.totalorder %s16, 0
      %p94 = por %p92, %p93
      %p95 = scmp.ne.s32.totalorder %s87, %s89
      %p96 = scmp.eq.s32.totalorder %s21, 1
      %p97 = por %p95, %p96
      %p98 = scmp.ne.s32.totalorder %s89, %s90
      %p99 = scmp.eq.s32.totalorder %s21, 0
      %p100 = por %p98, %p99
      %p101 = scmp.ne.s32.totalorder %s89, %s90
      %p102 = scmp.eq.s32.totalorder %s22, 1
      %p103 = por %p101, %p102
      %p105 = scmp.ne.s32.totalorder %s90, %s104
      %p106 = scmp.eq.s32.totalorder %s22, 0
      %p107 = por %p105, %p106
      %s108 = smul.u32 %s23, 2
      %s109 = sadd.s32 %s108, %s24
      %s110 = smul.u32 %s35, 2
      %s111 = sadd.s32 %s110, %s31
      %s112 = ssub.s32 %s109, %s111
      %p113 = scmp.eq.s32.totalorder %s112, 0
      %s115 = sadd.s32 %s114, 1
      %s116 = scalar_select %p113, %s114, %s115
      %p119 = pneg %p113
      %p120 = scmp.eq.s32.totalorder %s16, 1
      %p121 = por %p119, %p120
      %p122 = scmp.ne.s32.totalorder %s114, %s117
      %p123 = scmp.eq.s32.totalorder %s16, 0
      %p124 = por %p122, %p123
      %p125 = scmp.ne.s32.totalorder %s114, %s117
      %p126 = scmp.eq.s32.totalorder %s21, 1
      %p127 = por %p125, %p126
      %p128 = scmp.ne.s32.totalorder %s117, %s118
      %p129 = scmp.eq.s32.totalorder %s21, 0
      %p130 = por %p128, %p129
      %p131 = scmp.ne.s32.totalorder %s117, %s118
      %p132 = scmp.eq.s32.totalorder %s22, 1
      %p133 = por %p131, %p132
      %p135 = scmp.ne.s32.totalorder %s118, %s134
      %p136 = scmp.eq.s32.totalorder %s22, 0
      %p137 = por %p135, %p136
      %p138 = scmp.le.s32.totalorder 1, %s16
      %p139 = scmp.lt.s32.totalorder %s16, 3
      %p140 = pnand %p138, %p139
      %p141 = pneg %p140
      // Predicated region
      $region9: #{tpu_custom_call.1} parent=5 // pred_check
        _
      $region10: #{tpu_custom_call.1} parent=5 // pred_check_branch
        %143 = sbr.rel (%p140) target = $region12
      $region11: #{tpu_custom_call.1} parent=5 // pred_region
        %s144 = ssub.s32 %s16, 1
        // Predicated region
        $region13: #{tpu_custom_call.1} parent=11 // pred_check
          %p145 = pneg %p79
        $region14: #{tpu_custom_call.1} parent=11 // pred_check_branch
          %147 = sbr.rel (%p145) target = $region16
        $region15: #{tpu_custom_call.1} parent=11 // pred_region
          %149 = vsyncadd [#allocation7], 0
          %s150 = sshll.u32 %s1, 4
          %s151 = int_to_ptr.hbm [resolvable:$true] %s150
          %s152 = sshll.u32 [#allocation6], 4
          %s153 = int_to_ptr.vmem [resolvable:$true] %s152
          %158 = dma.hbm_to_vmem [thread:$0]  %s151, 3072, %s153, [#allocation7], 192, 192, 12
        $region16: #{tpu_custom_call.1} parent=11 // pred_fallthru
          _
        // Predicated region
        $region17: #{tpu_custom_call.1} parent=11 // pred_check
          %p159 = pneg %p100
        $region18: #{tpu_custom_call.1} parent=11 // pred_check_branch
          %161 = sbr.rel (%p159) target = $region20
        $region19: #{tpu_custom_call.1} parent=11 // pred_region
          _
        $region20: #{tpu_custom_call.1} parent=11 // pred_fallthru
          _
      $region12: #{tpu_custom_call.1} parent=5 // pred_fallthru
        _
      %p162 = scmp.lt.s32.totalorder %s16, 2
      // Predicated region
      $region21: #{tpu_custom_call.1} parent=5 // pred_check
        %p163 = pneg %p162
      $region22: #{tpu_custom_call.1} parent=5 // pred_check_branch
        %165 = sbr.rel (%p163) target = $region24
      $region23: #{tpu_custom_call.1} parent=5 // pred_region
        // Predicated region
        $region25: #{tpu_custom_call.1} parent=23 // pred_check
          %p166 = pneg %p52
        $region26: #{tpu_custom_call.1} parent=23 // pred_check_branch
          %168 = sbr.rel (%p166) target = $region28
        $region27: #{tpu_custom_call.1} parent=23 // pred_region
          %s169 = sand.u32 %s42, 1
          %s170 = scalar_lea.sflag [#allocation4], %s169
          %s171 = sand.u32 %s42, 1
          %s172 = smul.addr %s171, 96
          %s173 = scalar_lea.vmem [#allocation3], %s172
          %s174 = smul.u32 %s23, 2
          %s175 = sadd.s32 %s174, %s24
          %s176 = smul.u32 4, %s175
          %178 = vsyncadd %s170, 0
          %s179 = smul.addr %s176, 3
          %s180 = smul.addr %s179, 8
          %s181 = scalar_lea.hbm %s0, %s180
          %s182 = sshll.u32 %s181, 4
          %s183 = int_to_ptr.hbm [resolvable:$true] %s182
          %s184 = sshll.u32 %s173, 4
          %s185 = int_to_ptr.vmem [resolvable:$true] %s184
          %190 = dma.hbm_to_vmem [thread:$0]  %s183, 1536, %s185, %s170, 384, 384, 24
        $region28: #{tpu_custom_call.1} parent=23 // pred_fallthru
          _
      $region24: #{tpu_custom_call.1} parent=5 // pred_fallthru
        _
      %p191 = scmp.le.s32.totalorder 1, %s16
      %p192 = scmp.lt.s32.totalorder %s16, 3
      %p193 = pnand %p191, %p192
      %p194 = pneg %p193
      // Predicated region
      $region29: #{tpu_custom_call.1} parent=5 // pred_check
        _
      $region30: #{tpu_custom_call.1} parent=5 // pred_check_branch
        %196 = sbr.rel (%p193) target = $region32
      $region31: #{tpu_custom_call.1} parent=5 // pred_region
        %s197 = ssub.s32 %s16, 1
        %s198 = sand.u32 %s45, 1
        %s199 = scalar_lea.sflag [#allocation4], %s198
        %s200 = sand.u32 %s45, 1
        %s201 = smul.addr %s200, 96
        %s202 = scalar_lea.vmem [#allocation3], %s201
        // Predicated region
        $region33: #{tpu_custom_call.1} parent=31 // pred_check
          %p203 = pneg %p58
        $region34: #{tpu_custom_call.1} parent=31 // pred_check_branch
          %205 = sbr.rel (%p203) target = $region36
        $region35: #{tpu_custom_call.1} parent=31 // pred_region
          %207 = dma.done %s199, 1536
        $region36: #{tpu_custom_call.1} parent=31 // pred_fallthru
          _
        // Predicated region
        $region37: #{tpu_custom_call.1} parent=31 // pred_check
          %p208 = pneg %p79
        $region38: #{tpu_custom_call.1} parent=31 // pred_check_branch
          %210 = sbr.rel (%p208) target = $region40
        $region39: #{tpu_custom_call.1} parent=31 // pred_region
          %212 = dma.done [#allocation7], 3072
        $region40: #{tpu_custom_call.1} parent=31 // pred_fallthru
          _
        %s213 = sand.u32 %s45, 1
        %s214 = scalar_lea.sflag [#allocation4], %s213
        %s215 = sand.u32 %s45, 1
        %s216 = smul.addr %s215, 96
        %s217 = scalar_lea.vmem [#allocation3], %s216
        %p218 = pneg %p58
        %p219 = pneg %p55
        %p220 = pneg %p79
        %p221 = pneg %p76
        %p222 = pneg %p100
        %p223 = pneg %p97
        %p224 = pneg %p130
        %p225 = pneg %p127
        %s226 = sand.u32 %s117, 1
        %s227 = scalar_lea.sflag [#allocation5], %s226
        %s228 = sand.u32 %s117, 1
        %s229 = smul.addr %s228, 32
        %s230 = scalar_lea.vmem [#allocation8], %s229
        %s231 = smul.u32 %s25, 2
        %s232 = sadd.s32 %s231, %s26
        %s233 = smul.u32 4, %s232
        %s234 = smul.u32 %s25, 2
        %s235 = sadd.s32 %s234, %s26
        %s236 = smul.u32 4, %s235
        %p237 = scmp.eq.s32.totalorder %s26, 0
        // Predicated region
        $region41: #{tpu_custom_call.1} parent=31 // pred_check
          %p238 = pneg %p237
        $region42: #{tpu_custom_call.1} parent=31 // pred_check_branch
          %240 = sbr.rel (%p238) target = $region44
        $region43: #{tpu_custom_call.1} parent=31 // pred_region
          %241 = vst [vmem:[#allocation2] sm:$0xff] 0.0
        $region44: #{tpu_custom_call.1} parent=31 // pred_fallthru
          _
        %v242 = vld [vmem:[#allocation6] sm:$0xff]
        %v243 = vld [vmem:[#allocation6 + $0x8] sm:$0xf]
        %v244 = vld [vmem:[#allocation6 + $0xc] sm:$0xff]
        %v245 = vld [vmem:[#allocation6 + $0x14] sm:$0xf]
        %v246 = vld [vmem:[#allocation6 + $0x18] sm:$0xff]
        %v247 = vld [vmem:[#allocation6 + $0x20] sm:$0xf]
        %v248 = vld [vmem:[#allocation6 + $0x24] sm:$0xff]
        %v249 = vld [vmem:[#allocation6 + $0x2c] sm:$0xf]
        %v250 = vld [vmem:[#allocation6 + $0x30] sm:$0xff]
        %v251 = vld [vmem:[#allocation6 + $0x38] sm:$0xf]
        %v252 = vld [vmem:[#allocation6 + $0x3c] sm:$0xff]
        %v253 = vld [vmem:[#allocation6 + $0x44] sm:$0xf]
        %v254 = vld [vmem:[#allocation6 + $0x48] sm:$0xff]
        %v255 = vld [vmem:[#allocation6 + $0x50] sm:$0xf]
        %v256 = vld [vmem:[#allocation6 + $0x54] sm:$0xff]
        %v257 = vld [vmem:[#allocation6 + $0x5c] sm:$0xf]
        %v258 = vld [vmem:[#allocation6 + $0x60] sm:$0xff]
        %v259 = vld [vmem:[#allocation6 + $0x68] sm:$0xf]
        %v260 = vld [vmem:[#allocation6 + $0x6c] sm:$0xff]
        %v261 = vld [vmem:[#allocation6 + $0x74] sm:$0xf]
        %v262 = vld [vmem:[#allocation6 + $0x78] sm:$0xff]
        %v263 = vld [vmem:[#allocation6 + $0x80] sm:$0xf]
        %v264 = vld [vmem:[#allocation6 + $0x84] sm:$0xff]
        %v265 = vld [vmem:[#allocation6 + $0x8c] sm:$0xf]
        %v266 = vld [vmem:[#allocation6 + $0x90] sm:$0xff]
        %v267 = vld [vmem:[#allocation6 + $0x98] sm:$0xf]
        %v268 = vld [vmem:[#allocation6 + $0x9c] sm:$0xff]
        %v269 = vld [vmem:[#allocation6 + $0xa4] sm:$0xf]
        %v270 = vld [vmem:[#allocation6 + $0xa8] sm:$0xff]
        %v271 = vld [vmem:[#allocation6 + $0xb0] sm:$0xf]
        %v272 = vld [vmem:[#allocation6 + $0xb4] sm:$0xff]
        %v273 = vld [vmem:[#allocation6 + $0xbc] sm:$0xf]
        %v274 = vld [vmem:[%s2] sm:$0x1]
        %v276 = vperm.slane %v274, 0
        %v278 = vld [vmem:[#allocation2] sm:$0xff]
        %s279 = smul.u32 0, 3
        %s280 = smul.addr %s279, 8
        %s281 = scalar_lea.vmem %s202, %s280 [#allocation3]
        %v282 = vld [vmem:[%s281] sm:$0xff]
        %v283 = vld [vmem:[%s281 + $0x8] sm:$0xff]
        %v284 = vld [vmem:[%s281 + $0x10] sm:$0xff]
        %v285 = vpack.c.bf16 %v278, %v278
        %v318 = vunpack.c.l.b16 %v242
        %v319 = vunpack.c.h.b16 %v242
        %v320 = vunpack.c.l.b16 %v243
        %v321 = vunpack.c.l.b16 %v244
        %v322 = vunpack.c.h.b16 %v244
        %v323 = vunpack.c.l.b16 %v245
        %v324 = vunpack.c.l.b16 %v246
        %v325 = vunpack.c.h.b16 %v246
        %v326 = vunpack.c.l.b16 %v247
        %v327 = vunpack.c.l.b16 %v248
        %v328 = vunpack.c.h.b16 %v248
        %v329 = vunpack.c.l.b16 %v249
        %v330 = vunpack.c.l.b16 %v250
        %v331 = vunpack.c.h.b16 %v250
        %v332 = vunpack.c.l.b16 %v251
        %v333 = vunpack.c.l.b16 %v252
        %v334 = vunpack.c.h.b16 %v252
        %v335 = vunpack.c.l.b16 %v253
        %v336 = vunpack.c.l.b16 %v254
        %v337 = vunpack.c.h.b16 %v254
        %v338 = vunpack.c.l.b16 %v255
        %v339 = vunpack.c.l.b16 %v256
        %v340 = vunpack.c.h.b16 %v256
        %v341 = vunpack.c.l.b16 %v257
        %v342 = vunpack.c.l.b16 %v258
        %v343 = vunpack.c.h.b16 %v258
        %v344 = vunpack.c.l.b16 %v259
        %v345 = vunpack.c.l.b16 %v260
        %v346 = vunpack.c.h.b16 %v260
        %v347 = vunpack.c.l.b16 %v261
        %v348 = vunpack.c.l.b16 %v262
        %v349 = vunpack.c.h.b16 %v262
        %v350 = vunpack.c.l.b16 %v263
        %v351 = vunpack.c.l.b16 %v264
        %v352 = vunpack.c.h.b16 %v264
        %v353 = vunpack.c.l.b16 %v265
        %v354 = vunpack.c.l.b16 %v266
        %v355 = vunpack.c.h.b16 %v266
        %v356 = vunpack.c.l.b16 %v267
        %v357 = vunpack.c.l.b16 %v268
        %v358 = vunpack.c.h.b16 %v268
        %v359 = vunpack.c.l.b16 %v269
        %v360 = vunpack.c.l.b16 %v270
        %v361 = vunpack.c.h.b16 %v270
        %v362 = vunpack.c.l.b16 %v271
        %v363 = vunpack.c.l.b16 %v272
        %v364 = vunpack.c.h.b16 %v272
        %v365 = vunpack.c.l.b16 %v273
        %v366 = vpack.c.b16 %v321, %v318
        %v367 = vpack.c.b16 %v322, %v319
        %v368 = vpack.c.b16 %v323, %v320
        %v369 = vpack.c.b16 %v327, %v324
        %v370 = vpack.c.b16 %v328, %v325
        %v371 = vpack.c.b16 %v329, %v326
        %v372 = vpack.c.b16 %v333, %v330
        %v373 = vpack.c.b16 %v334, %v331
        %v374 = vpack.c.b16 %v335, %v332
        %v375 = vpack.c.b16 %v339, %v336
        %v376 = vpack.c.b16 %v340, %v337
        %v377 = vpack.c.b16 %v341, %v338
        %v378 = vpack.c.b16 %v345, %v342
        %v379 = vpack.c.b16 %v346, %v343
        %v380 = vpack.c.b16 %v347, %v344
        %v381 = vpack.c.b16 %v351, %v348
        %v382 = vpack.c.b16 %v352, %v349
        %v383 = vpack.c.b16 %v353, %v350
        %v384 = vpack.c.b16 %v357, %v354
        %v385 = vpack.c.b16 %v358, %v355
        %v386 = vpack.c.b16 %v359, %v356
        %v387 = vpack.c.b16 %v363, %v360
        %v388 = vpack.c.b16 %v364, %v361
        %v389 = vpack.c.b16 %v365, %v362
        %414 = vmatpush.bf16.msra.mxu0 %v387
        %415 = vmatpush.bf16.msra.mxu0 %v384
        %416 = vmatpush.bf16.msra.mxu0 %v381
        %417 = vmatpush.bf16.msra.mxu0 %v378
        %418 = vmatpush.bf16.msra.mxu0 %v375
        %419 = vmatpush.bf16.msra.mxu0 %v372
        %420 = vmatpush.bf16.msra.mxu0 %v369
        %421 = vmatpush.bf16.msra.mxu0 %v366
        %422 = vmatmul.bf16.gmra.mxu0 %v285
        %v423 = vpop.f32.mrf.mxu0
        %v424 = vadd.f32 0.0, %v423
        %v425 = vpop.f32.mrf.mxu0
        %426 = vdwg.mxu0
        %427 = vmatpush.bf16.msra.mxu0 %v388
        %428 = vmatpush.bf16.msra.mxu0 %v385
        %429 = vmatpush.bf16.msra.mxu0 %v382
        %430 = vmatpush.bf16.msra.mxu0 %v379
        %431 = vmatpush.bf16.msra.mxu0 %v376
        %432 = vmatpush.bf16.msra.mxu0 %v373
        %433 = vmatpush.bf16.msra.mxu0 %v370
        %434 = vmatpush.bf16.msra.mxu0 %v367
        %435 = vmatmul.bf16.gmra.mxu0 %v285
        %v436 = vpop.f32.mrf.mxu0
        %v437 = vadd.f32 0.0, %v436
        %v438 = vpop.f32.mrf.mxu0
        %439 = vdwg.mxu0
        %440 = vmatpush.bf16.msra.mxu0 %v389
        %441 = vmatpush.bf16.msra.mxu0 %v386
        %442 = vmatpush.bf16.msra.mxu0 %v383
        %443 = vmatpush.bf16.msra.mxu0 %v380
        %444 = vmatpush.bf16.msra.mxu0 %v377
        %445 = vmatpush.bf16.msra.mxu0 %v374
        %446 = vmatpush.bf16.msra.mxu0 %v371
        %447 = vmatpush.bf16.msra.mxu0 %v368
        %448 = vmatmul.bf16.gmra.mxu0 %v285
        %v449 = vpop.f32.mrf.mxu0
        %v450 = vadd.f32 0.0, %v449
        %v451 = vpop.f32.mrf.mxu0
        %452 = vdwg.mxu0
        %v453 = vadd.f32 %v282, %v424
        %v454 = vmul.f32 %v453, 0.5
        %v455 = vtanh.pop %v454
        %v456 = vmul.f32 %v455, 0.5
        %v457 = vadd.f32 %v456, 0.5
        %v458 = vadd.f32 %v283, %v437
        %v459 = vmul.f32 %v458, 0.5
        %v460 = vtanh.pop %v459
        %v461 = vmul.f32 %v460, 0.5
        %v462 = vadd.f32 %v461, 0.5
        %v463 = vadd.f32 %v450, %v276
        %v464 = vmul.f32 %v457, %v463
        %v465 = vadd.f32 %v284, %v464
        %v466 = vtanh.pop %v465
        %v467 = vsub.f32 1.0, %v462
        %v468 = vmul.f32 %v467, %v466
        %v469 = vmul.f32 %v462, %v278
        %v470 = vadd.f32 %v468, %v469
        %471 = vst [vmem:[%s230] sm:$0xff] %v470
        %s472 = smul.u32 1, 3
        %s473 = smul.addr %s472, 8
        %s474 = scalar_lea.vmem %s202, %s473 [#allocation3]
        %v475 = vld [vmem:[%s474] sm:$0xff]
        %v476 = vld [vmem:[%s474 + $0x8] sm:$0xff]
        %v477 = vld [vmem:[%s474 + $0x10] sm:$0xff]
        %v478 = vpack.c.bf16 %v470, %v470
        %479 = vmatpush.bf16.msra.mxu0 %v387
        %480 = vmatpush.bf16.msra.mxu0 %v384
        %481 = vmatpush.bf16.msra.mxu0 %v381
        %482 = vmatpush.bf16.msra.mxu0 %v378
        %483 = vmatpush.bf16.msra.mxu0 %v375
        %484 = vmatpush.bf16.msra.mxu0 %v372
        %485 = vmatpush.bf16.msra.mxu0 %v369
        %486 = vmatpush.bf16.msra.mxu0 %v366
        %487 = vmatmul.bf16.gmra.mxu0 %v478
        %v488 = vpop.f32.mrf.mxu0
        %v489 = vadd.f32 0.0, %v488
        %v490 = vpop.f32.mrf.mxu0
        %491 = vdwg.mxu0
        %492 = vmatpush.bf16.msra.mxu0 %v388
        %493 = vmatpush.bf16.msra.mxu0 %v385
        %494 = vmatpush.bf16.msra.mxu0 %v382
        %495 = vmatpush.bf16.msra.mxu0 %v379
        %496 = vmatpush.bf16.msra.mxu0 %v376
        %497 = vmatpush.bf16.msra.mxu0 %v373
        %498 = vmatpush.bf16.msra.mxu0 %v370
        %499 = vmatpush.bf16.msra.mxu0 %v367
        %500 = vmatmul.bf16.gmra.mxu0 %v478
        %v501 = vpop.f32.mrf.mxu0
        %v502 = vadd.f32 0.0, %v501
        %v503 = vpop.f32.mrf.mxu0
        %504 = vdwg.mxu0
        %505 = vmatpush.bf16.msra.mxu0 %v389
        %506 = vmatpush.bf16.msra.mxu0 %v386
        %507 = vmatpush.bf16.msra.mxu0 %v383
        %508 = vmatpush.bf16.msra.mxu0 %v380
        %509 = vmatpush.bf16.msra.mxu0 %v377
        %510 = vmatpush.bf16.msra.mxu0 %v374
        %511 = vmatpush.bf16.msra.mxu0 %v371
        %512 = vmatpush.bf16.msra.mxu0 %v368
        %513 = vmatmul.bf16.gmra.mxu0 %v478
        %v514 = vpop.f32.mrf.mxu0
        %v515 = vadd.f32 0.0, %v514
        %v516 = vpop.f32.mrf.mxu0
        %517 = vdwg.mxu0
        %v518 = vadd.f32 %v475, %v489
        %v519 = vmul.f32 %v518, 0.5
        %v520 = vtanh.pop %v519
        %v521 = vmul.f32 %v520, 0.5
        %v522 = vadd.f32 %v521, 0.5
        %v523 = vadd.f32 %v476, %v502
        %v524 = vmul.f32 %v523, 0.5
        %v525 = vtanh.pop %v524
        %v526 = vmul.f32 %v525, 0.5
        %v527 = vadd.f32 %v526, 0.5
        %v528 = vadd.f32 %v515, %v276
        %v529 = vmul.f32 %v522, %v528
        %v530 = vadd.f32 %v477, %v529
        %v531 = vtanh.pop %v530
        %v532 = vsub.f32 1.0, %v527
        %v533 = vmul.f32 %v532, %v531
        %v534 = vmul.f32 %v527, %v470
        %v535 = vadd.f32 %v533, %v534
        %s536 = scalar_lea.vmem %s230, 8 [#allocation8]
        %537 = vst [vmem:[%s536] sm:$0xff] %v535
        %s538 = smul.u32 2, 3
        %s539 = smul.addr %s538, 8
        %s540 = scalar_lea.vmem %s202, %s539 [#allocation3]
        %v541 = vld [vmem:[%s540] sm:$0xff]
        %v542 = vld [vmem:[%s540 + $0x8] sm:$0xff]
        %v543 = vld [vmem:[%s540 + $0x10] sm:$0xff]
        %v544 = vpack.c.bf16 %v535, %v535
        %545 = vmatpush.bf16.msra.mxu0 %v387
        %546 = vmatpush.bf16.msra.mxu0 %v384
        %547 = vmatpush.bf16.msra.mxu0 %v381
        %548 = vmatpush.bf16.msra.mxu0 %v378
        %549 = vmatpush.bf16.msra.mxu0 %v375
        %550 = vmatpush.bf16.msra.mxu0 %v372
        %551 = vmatpush.bf16.msra.mxu0 %v369
        %552 = vmatpush.bf16.msra.mxu0 %v366
        %553 = vmatmul.bf16.gmra.mxu0 %v544
        %v554 = vpop.f32.mrf.mxu0
        %v555 = vadd.f32 0.0, %v554
        %v556 = vpop.f32.mrf.mxu0
        %557 = vdwg.mxu0
        %558 = vmatpush.bf16.msra.mxu0 %v388
        %559 = vmatpush.bf16.msra.mxu0 %v385
        %560 = vmatpush.bf16.msra.mxu0 %v382
        %561 = vmatpush.bf16.msra.mxu0 %v379
        %562 = vmatpush.bf16.msra.mxu0 %v376
        %563 = vmatpush.bf16.msra.mxu0 %v373
        %564 = vmatpush.bf16.msra.mxu0 %v370
        %565 = vmatpush.bf16.msra.mxu0 %v367
        %566 = vmatmul.bf16.gmra.mxu0 %v544
        %v567 = vpop.f32.mrf.mxu0
        %v568 = vadd.f32 0.0, %v567
        %v569 = vpop.f32.mrf.mxu0
        %570 = vdwg.mxu0
        %571 = vmatpush.bf16.msra.mxu0 %v389
        %572 = vmatpush.bf16.msra.mxu0 %v386
        %573 = vmatpush.bf16.msra.mxu0 %v383
        %574 = vmatpush.bf16.msra.mxu0 %v380
        %575 = vmatpush.bf16.msra.mxu0 %v377
        %576 = vmatpush.bf16.msra.mxu0 %v374
        %577 = vmatpush.bf16.msra.mxu0 %v371
        %578 = vmatpush.bf16.msra.mxu0 %v368
        %579 = vmatmul.bf16.gmra.mxu0 %v544
        %v580 = vpop.f32.mrf.mxu0
        %v581 = vadd.f32 0.0, %v580
        %v582 = vpop.f32.mrf.mxu0
        %583 = vdwg.mxu0
        %v584 = vadd.f32 %v541, %v555
        %v585 = vmul.f32 %v584, 0.5
        %v586 = vtanh.pop %v585
        %v587 = vmul.f32 %v586, 0.5
        %v588 = vadd.f32 %v587, 0.5
        %v589 = vadd.f32 %v542, %v568
        %v590 = vmul.f32 %v589, 0.5
        %v591 = vtanh.pop %v590
        %v592 = vmul.f32 %v591, 0.5
        %v593 = vadd.f32 %v592, 0.5
        %v594 = vadd.f32 %v581, %v276
        %v595 = vmul.f32 %v588, %v594
        %v596 = vadd.f32 %v543, %v595
        %v597 = vtanh.pop %v596
        %v598 = vsub.f32 1.0, %v593
        %v599 = vmul.f32 %v598, %v597
        %v600 = vmul.f32 %v593, %v535
        %v601 = vadd.f32 %v599, %v600
        %s602 = scalar_lea.vmem %s230, 16 [#allocation8]
        %603 = vst [vmem:[%s602] sm:$0xff] %v601
        %s604 = smul.u32 3, 3
        %s605 = smul.addr %s604, 8
        %s606 = scalar_lea.vmem %s202, %s605 [#allocation3]
        %v607 = vld [vmem:[%s606] sm:$0xff]
        %v608 = vld [vmem:[%s606 + $0x8] sm:$0xff]
        %v609 = vld [vmem:[%s606 + $0x10] sm:$0xff]
        %v610 = vpack.c.bf16 %v601, %v601
        %611 = vmatpush.bf16.msra.mxu0 %v387
        %612 = vmatpush.bf16.msra.mxu0 %v384
        %613 = vmatpush.bf16.msra.mxu0 %v381
        %614 = vmatpush.bf16.msra.mxu0 %v378
        %615 = vmatpush.bf16.msra.mxu0 %v375
        %616 = vmatpush.bf16.msra.mxu0 %v372
        %617 = vmatpush.bf16.msra.mxu0 %v369
        %618 = vmatpush.bf16.msra.mxu0 %v366
        %619 = vmatmul.bf16.gmra.mxu0 %v610
        %v620 = vpop.f32.mrf.mxu0
        %v621 = vadd.f32 0.0, %v620
        %v622 = vpop.f32.mrf.mxu0
        %623 = vdwg.mxu0
        %624 = vmatpush.bf16.msra.mxu0 %v388
        %625 = vmatpush.bf16.msra.mxu0 %v385
        %626 = vmatpush.bf16.msra.mxu0 %v382
        %627 = vmatpush.bf16.msra.mxu0 %v379
        %628 = vmatpush.bf16.msra.mxu0 %v376
        %629 = vmatpush.bf16.msra.mxu0 %v373
        %630 = vmatpush.bf16.msra.mxu0 %v370
        %631 = vmatpush.bf16.msra.mxu0 %v367
        %632 = vmatmul.bf16.gmra.mxu0 %v610
        %v633 = vpop.f32.mrf.mxu0
        %v634 = vadd.f32 0.0, %v633
        %v635 = vpop.f32.mrf.mxu0
        %636 = vdwg.mxu0
        %637 = vmatpush.bf16.msra.mxu0 %v389
        %638 = vmatpush.bf16.msra.mxu0 %v386
        %639 = vmatpush.bf16.msra.mxu0 %v383
        %640 = vmatpush.bf16.msra.mxu0 %v380
        %641 = vmatpush.bf16.msra.mxu0 %v377
        %642 = vmatpush.bf16.msra.mxu0 %v374
        %643 = vmatpush.bf16.msra.mxu0 %v371
        %644 = vmatpush.bf16.msra.mxu0 %v368
        %645 = vmatmul.bf16.gmra.mxu0 %v610
        %v646 = vpop.f32.mrf.mxu0
        %v647 = vadd.f32 0.0, %v646
        %v648 = vpop.f32.mrf.mxu0
        %649 = vdwg.mxu0
        %v650 = vadd.f32 %v607, %v621
        %v651 = vmul.f32 %v650, 0.5
        %v652 = vtanh.pop %v651
        %v653 = vmul.f32 %v652, 0.5
        %v654 = vadd.f32 %v653, 0.5
        %v655 = vadd.f32 %v608, %v634
        %v656 = vmul.f32 %v655, 0.5
        %v657 = vtanh.pop %v656
        %v658 = vmul.f32 %v657, 0.5
        %v659 = vadd.f32 %v658, 0.5
        %v660 = vadd.f32 %v647, %v276
        %v661 = vmul.f32 %v654, %v660
        %v662 = vadd.f32 %v609, %v661
        %v663 = vtanh.pop %v662
        %v664 = vsub.f32 1.0, %v659
        %v665 = vmul.f32 %v664, %v663
        %v666 = vmul.f32 %v659, %v601
        %v667 = vadd.f32 %v665, %v666
        %s668 = scalar_lea.vmem %s230, 24 [#allocation8]
        %669 = vst [vmem:[%s668] sm:$0xff] %v667
        %670 = vst [vmem:[#allocation2] sm:$0xff] %v667
        %s671 = sand.u32 %s117, 1
        %s672 = scalar_lea.sflag [#allocation5], %s671
        %s673 = sand.u32 %s117, 1
        %s674 = smul.addr %s673, 32
        %s675 = scalar_lea.vmem [#allocation8], %s674
        // Predicated region
        $region45: #{tpu_custom_call.1} parent=31 // pred_check
          %p676 = pneg %p127
        $region46: #{tpu_custom_call.1} parent=31 // pred_check_branch
          %678 = sbr.rel (%p676) target = $region48
        $region47: #{tpu_custom_call.1} parent=31 // pred_region
          %s679 = smul.u32 %s25, 2
          %s680 = sadd.s32 %s679, %s26
          %s681 = smul.u32 4, %s680
          %683 = vsyncadd %s672, 0
          %s684 = smul.addr %s681, 8
          %s685 = scalar_lea.hbm %s3, %s684
          %s686 = sshll.u32 %s675, 4
          %s687 = int_to_ptr.vmem [resolvable:$true] %s686
          %s688 = sshll.u32 %s685, 4
          %s689 = int_to_ptr.hbm [resolvable:$true] %s688
          %694 = dma.vmem_to_hbm [thread:$0]  %s687, 512, %s689, %s672, 128, 128, 8
        $region48: #{tpu_custom_call.1} parent=31 // pred_fallthru
          _
      $region32: #{tpu_custom_call.1} parent=5 // pred_fallthru
        _
      %p695 = scmp.le.s32.totalorder 2, %s16
      // Predicated region
      $region49: #{tpu_custom_call.1} parent=5 // pred_check
        %p696 = pneg %p695
      $region50: #{tpu_custom_call.1} parent=5 // pred_check_branch
        %698 = sbr.rel (%p696) target = $region52
      $region51: #{tpu_custom_call.1} parent=5 // pred_region
        %s699 = ssub.s32 %s16, 2
        // Predicated region
        $region53: #{tpu_custom_call.1} parent=51 // pred_check
          %p700 = pneg %p133
        $region54: #{tpu_custom_call.1} parent=51 // pred_check_branch
          %702 = sbr.rel (%p700) target = $region56
        $region55: #{tpu_custom_call.1} parent=51 // pred_region
          %s703 = sand.u32 %s118, 1
          %s704 = scalar_lea.sflag [#allocation5], %s703
          %s705 = sand.u32 %s118, 1
          %s706 = smul.addr %s705, 32
          %s707 = scalar_lea.vmem [#allocation8], %s706
          %709 = dma.done %s704, 512
        $region56: #{tpu_custom_call.1} parent=51 // pred_fallthru
          _
      $region52: #{tpu_custom_call.1} parent=5 // pred_fallthru
        _
    $region6: #{tpu_custom_call.1} parent=1 // loop_footer
      %s20 = sadd.s32 1, %s16
    $region7: #{tpu_custom_call.1} parent=1 // loop_footer_branch
      %15 = sbr.rel target = $region3
    $region8: #{tpu_custom_call.1} parent=1 // loop_exit
      _
    %710 = vsyncpa [#allocation4], 1
    %s711 = scalar_lea.sflag [#allocation4], 1
    %712 = vsyncpa %s711, 1
    %713 = vsyncpa [#allocation7], 1
    %714 = vsyncpa [#allocation5], 1
    %s715 = scalar_lea.sflag [#allocation5], 1
    %716 = vsyncpa %s715, 1

</llo_original>
